<compile_context>
chip_gen: v5e
topology: v5e:2x2
jax: 0.10.0
libtpu: 0.0.40
codegen_flags: <defaults>
</compile_context>

<pallas_src>
import jax
import jax.numpy as jnp
from jax.experimental import pallas as pl
from jax.experimental.pallas import tpu as pltpu


def linear_kernel(x_ref, wb_ref, o_ref):
    # x_ref : SMEM (1, 2)  -- input activations, read as scalars
    # wb_ref: VMEM (3, 4)  -- rows 0..1 = w_t (in_features x out_features), row 2 = bias
    # o_ref : VMEM (1, 4)
    x0 = x_ref[0, 0]
    x1 = x_ref[0, 1]
    # Two VPU FMAs on one vreg row; no MXU push/drain for 8 MACs.
    o_ref[...] = x0 * wb_ref[0:1, :] + x1 * wb_ref[1:2, :] + wb_ref[2:3, :]


def linear_pallas(x, wb):
    B, _IN = x.shape
    OUT = wb.shape[1]
    return pl.pallas_call(
        linear_kernel,
        out_shape=jax.ShapeDtypeStruct((B, OUT), jnp.float32),
        in_specs=[
            pl.BlockSpec(memory_space=pltpu.MemorySpace.SMEM),  # tiny x -> scalar reads
            pl.BlockSpec(memory_space=pltpu.MemorySpace.VMEM),  # packed [w_t; b]
        ],
        out_specs=pl.BlockSpec(memory_space=pltpu.MemorySpace.VMEM),
        cost_estimate=pl.CostEstimate(flops=16, transcendentals=0, bytes_accessed=64),
    )(x, wb)


def pack_params(w, b):
    """One-time parameter prep (hoisted out of the per-call path).

    w: PyTorch Linear layout (out_features, in_features)
    b: (out_features,)
    Returns a single (in_features + 1, out_features) array [w.T ; b].
    """
    return jnp.concatenate([w.T, b.reshape(1, -1)], axis=0).astype(jnp.float32)


def model_forward(x, wb_packed):
    """Mirrors Model.forward:
       y = Linear(2,4)(x); if y.ndim == 2: y = y.flatten()[None]; y = cat([y], 0)
    """
    y = linear_pallas(x, wb_packed)
    if y.ndim == 2:
        y = y.reshape(-1)                   # flatten
        y = y[None, :]                      # unsqueeze(0)
        y = jnp.concatenate([y], axis=0)    # cat([y], dim=0) -- identity
    return y


if __name__ == "__main__":
    key = jax.random.PRNGKey(0)
    kx, kw, kb = jax.random.split(key, 3)

    # Module shapes: nn.Linear(2, 4), input x of shape (1, 2)
    x = jax.random.normal(kx, (1, 2), dtype=jnp.float32)
    w = jax.random.normal(kw, (4, 2), dtype=jnp.float32) * 0.5   # (out, in)
    b = jax.random.normal(kb, (4,), dtype=jnp.float32) * 0.1

    # Parameter packing done once, outside the per-call path.
    wb_packed = pack_params(w, b)

    out = model_forward(x, wb_packed)
    out = jax.block_until_ready(out)

    # Reference check in plain JAX
    ref = (x @ w.T + b).reshape(1, -1)
    assert out.shape == (1, 4), out.shape
    assert jnp.allclose(out, ref, atol=1e-5, rtol=1e-5), (out, ref)

    print("KERNEL_OK")
</pallas_src>

<mosaic_0001>
module attributes {stable_mosaic.version = 11 : i64} {
  func.func @linear_kernel(%arg0: memref<1x2xf32, #tpu.memory_space<smem>>, %arg1: memref<3x4xf32, #tpu.memory_space<vmem>>, %arg2: memref<1x4xf32, #tpu.memory_space<vmem>>) attributes {dimension_semantics = [], scalar_prefetch = 0 : i64, scratch_operands = 0 : i64, tpu.core_type = #tpu.core_type<tc>} {
    %c0 = arith.constant 0 : index
    %c0_0 = arith.constant 0 : index
    %0 = memref.load %arg0[%c0, %c0_0] : memref<1x2xf32, #tpu.memory_space<smem>>
    %c0_1 = arith.constant 0 : index
    %c1 = arith.constant 1 : index
    %1 = memref.load %arg0[%c0_1, %c1] : memref<1x2xf32, #tpu.memory_space<smem>>
    %c0_2 = arith.constant 0 : index
    %c0_3 = arith.constant 0 : index
    %2 = vector.load %arg1[%c0_2, %c0_3] : memref<3x4xf32, #tpu.memory_space<vmem>>, vector<1x4xf32>
    %3 = vector.broadcast %0 : f32 to vector<1x4xf32>
    %4 = arith.mulf %3, %2 : vector<1x4xf32>
    %c1_4 = arith.constant 1 : index
    %c0_5 = arith.constant 0 : index
    %5 = vector.load %arg1[%c1_4, %c0_5] : memref<3x4xf32, #tpu.memory_space<vmem>>, vector<1x4xf32>
    %6 = vector.broadcast %1 : f32 to vector<1x4xf32>
    %7 = arith.mulf %6, %5 : vector<1x4xf32>
    %8 = arith.addf %4, %7 : vector<1x4xf32>
    %c2 = arith.constant 2 : index
    %c0_6 = arith.constant 0 : index
    %9 = vector.load %arg1[%c2, %c0_6] : memref<3x4xf32, #tpu.memory_space<vmem>>, vector<1x4xf32>
    %10 = arith.addf %8, %9 : vector<1x4xf32>
    %c0_7 = arith.constant 0 : index
    %c0_8 = arith.constant 0 : index
    %11 = vector.load %arg2[%c0_7, %c0_8] : memref<1x4xf32, #tpu.memory_space<vmem>>, vector<1x4xf32>
    tpu.vector_store %arg2[%c0_7, %c0_8], %10 {strides = array<i32>} : memref<1x4xf32, #tpu.memory_space<vmem>>, vector<1x4xf32>,
    return
  }
}

</mosaic_0001>

<llo_original>
// kernel: tpu_custom_call.1
$region0: #{tpu_custom_call.1}
  #allocation0 [shape = 'u32[]', space=smem, size = 0x4, offset = 0x4, fixed_abs, tag = 'smem constant byte address 0x4 - core index']
  #allocation1 [shape = 'u32[72,128]{1,0:T(1,128)}', space=vmem, size = 0x9000, scoped, tag = 'internal scratch']
  %s0 = inlined_call_operand.hbm [shape: f32[1,2], index: 0, kind: input, shape index: {}]
  %s1 = inlined_call_operand.hbm [shape: f32[3,4], index: 1, kind: input, shape index: {}]
  %s2 = inlined_call_operand.hbm [shape: f32[1,4], index: 2, kind: output, shape index: {}]
  %s3 = sld [smem:[#allocation0]]
  $region26: #{tpu_custom_call.1} parent=0
    _
  %s5 = ssub.s32 1, %s3
  %s6 = scalar_select 0, %s5, %s3
  $region1: #{tpu_custom_call.1} parent=0
    #allocation2 [shape = 'u8[512]{0}', space=smem, size = 0x200, scoped, tag = 'input window, operand 0, single buffered']
    #allocation3 [shape = 's32[1]{0}', space=sflag, size = 0x4, scoped, tag = 'scoped memory for tpu_custom_call.1']
    #allocation4 [shape = 's32[1]{0}', space=sflag, size = 0x4, scoped, tag = 'scoped memory for tpu_custom_call.1']
    #allocation5 [shape = 's32[1]{0}', space=sflag, size = 0x4, scoped, tag = 'scoped memory for tpu_custom_call.1']
    #allocation6 [shape = 'u8[2048]{0}', space=vmem, size = 0x800, scoped, tag = 'input window, operand 1, single buffered']
    #allocation7 [shape = 'u8[512]{0}', space=vmem, size = 0x400, scoped, tag = 'output window, operand 0, single buffered']
    %7 = vsyncpa [#allocation5], 0
    %8 = vsyncpa [#allocation3], 0
    %9 = vsyncpa [#allocation4], 0
    // Predicated region
    $region2: #{tpu_custom_call.1} parent=1 // pred_check
      _
    $region3: #{tpu_custom_call.1} parent=1 // pred_check_branch
      %11 = sbr.rel (0) target = $region5
    $region4: #{tpu_custom_call.1} parent=1 // pred_region
      %13 = vsyncadd [#allocation5], 0
      %s15 = sshll.u32 %s0, 4
      %s16 = int_to_ptr.hbm [resolvable:$true] %s15
      %18 = dma.hbm_to_smem %s16, 16, [#allocation2], [#allocation5]
    $region5: #{tpu_custom_call.1} parent=1 // pred_fallthru
      _
    // Predicated region
    $region6: #{tpu_custom_call.1} parent=1 // pred_check
      _
    $region7: #{tpu_custom_call.1} parent=1 // pred_check_branch
      %20 = sbr.rel (0) target = $region9
    $region8: #{tpu_custom_call.1} parent=1 // pred_region
      %22 = vsyncadd [#allocation3], 0
      %s24 = sshll.u32 %s1, 4
      %s25 = int_to_ptr.hbm [resolvable:$true] %s24
      %s26 = sshll.u32 [#allocation6], 4
      %s27 = int_to_ptr.vmem [resolvable:$true] %s26
      %29 = dma.hbm_to_vmem [thread:$0]  %s25, 64, %s27, [#allocation3]
    $region9: #{tpu_custom_call.1} parent=1 // pred_fallthru
      _
    // Predicated region
    $region10: #{tpu_custom_call.1} parent=1 // pred_check
      _
    $region11: #{tpu_custom_call.1} parent=1 // pred_check_branch
      %31 = sbr.rel (0) target = $region13
    $region12: #{tpu_custom_call.1} parent=1 // pred_region
      %33 = dma.done [#allocation5], 16
    $region13: #{tpu_custom_call.1} parent=1 // pred_fallthru
      _
    // Predicated region
    $region14: #{tpu_custom_call.1} parent=1 // pred_check
      _
    $region15: #{tpu_custom_call.1} parent=1 // pred_check_branch
      %35 = sbr.rel (0) target = $region17
    $region16: #{tpu_custom_call.1} parent=1 // pred_region
      %37 = dma.done [#allocation3], 64
    $region17: #{tpu_custom_call.1} parent=1 // pred_fallthru
      _
    %38 = sfence
    %s39 = sld [smem:[#allocation2]]
    %s40 = sld [smem:[#allocation2 + $0x1]]
    %v41 = vld [vmem:[#allocation6] sm:$0x1]
    %v42 = vstv %s39
    %v43 = vmul.f32 %v42, %v41
    %v44 = vld [vmem:[#allocation6 + $0x1] sm:$0x1]
    %v45 = vstv %s40
    %v46 = vmul.f32 %v45, %v44
    %v47 = vadd.f32 %v43, %v46
    %v48 = vld [vmem:[#allocation6 + $0x2] sm:$0x1]
    %v49 = vadd.f32 %v47, %v48
    %vm50 = vcmask 24576
    %51 = vst.msk [vmem:[#allocation7] sm:$0x1] %vm50, %v49
    // Predicated region
    $region18: #{tpu_custom_call.1} parent=1 // pred_check
      _
    $region19: #{tpu_custom_call.1} parent=1 // pred_check_branch
      %53 = sbr.rel (0) target = $region21
    $region20: #{tpu_custom_call.1} parent=1 // pred_region
      %55 = vsyncadd [#allocation4], 0
      %s57 = sshll.u32 [#allocation7], 4
      %s58 = int_to_ptr.vmem [resolvable:$true] %s57
      %s59 = sshll.u32 %s2, 4
      %s60 = int_to_ptr.hbm [resolvable:$true] %s59
      %62 = dma.vmem_to_hbm [thread:$0]  %s58, 16, %s60, [#allocation4]
    $region21: #{tpu_custom_call.1} parent=1 // pred_fallthru
      _
    // Predicated region
    $region22: #{tpu_custom_call.1} parent=1 // pred_check
      _
    $region23: #{tpu_custom_call.1} parent=1 // pred_check_branch
      %64 = sbr.rel (0) target = $region25
    $region24: #{tpu_custom_call.1} parent=1 // pred_region
      %66 = dma.done [#allocation4], 16
    $region25: #{tpu_custom_call.1} parent=1 // pred_fallthru
      _
    %67 = vsyncpa [#allocation3], 1
    %68 = vsyncpa [#allocation4], 1
    %69 = vsyncpa [#allocation5], 1

</llo_original>
